<compile_context>
chip_gen: v7x
topology: tpu7x:2x2x1
jax: 0.10.0
libtpu: 0.0.40
codegen_flags: <defaults>
</compile_context>

<pallas_src>
import functools

import jax
import jax.numpy as jnp
from jax.experimental import pallas as pl
from jax.experimental.pallas import tpu as pltpu


EMBEDDING_SIZE = 8
HIDDEN_SIZE = 16
OUTPUT_SIZE = 2


# ----------------------------------------------------------------------------
# Per-step math (exact module semantics).  Gate layout is [i | f | o | g].
# ----------------------------------------------------------------------------
def _decoder_step(x, h, c, w1, b1, wihh, b_lstm, w2, b2):
    H = HIDDEN_SIZE
    B = x.shape[0]

    # linear1 + relu.  K = OUTPUT_SIZE = 2: VPU broadcast mul-add, no MXU.
    emb = jnp.broadcast_to(b1, (B, b1.shape[-1]))
    for k in range(OUTPUT_SIZE):
        emb = emb + x[:, k:k + 1] * w1[k:k + 1, :]
    emb = jnp.maximum(emb, 0.0)

    # Single fused gate matmul: [emb | h] @ [W_ih^T ; W_hh^T]  -> (B, 4H)
    xh = jnp.concatenate([emb, h], axis=-1)           # (B, E+H)
    gates = jnp.dot(xh, wihh, preferred_element_type=jnp.float32) + b_lstm

    # One sigmoid launch on contiguous [i|f|o], one tanh launch on [g].
    sig = jax.nn.sigmoid(gates[:, :3 * H])
    g_gate = jnp.tanh(gates[:, 3 * H:])
    i_gate = sig[:, 0 * H:1 * H]
    f_gate = sig[:, 1 * H:2 * H]
    o_gate = sig[:, 2 * H:3 * H]

    c_new = f_gate * c + i_gate * g_gate
    h_new = o_gate * jnp.tanh(c_new)

    out = jnp.dot(h_new, w2, preferred_element_type=jnp.float32) + b2
    return out, h_new, c_new


# ----------------------------------------------------------------------------
# Single-step kernel (matches DecoderRNN.forward exactly).
# One packed output slab: [out | h_new | c_new]  -> one store, one DMA.
# ----------------------------------------------------------------------------
def _decoder_step_kernel(
    x_ref,        # (TB, OUTPUT_SIZE)
    h_ref,        # (TB, H)
    c_ref,        # (TB, H)
    w1_ref,       # (OUTPUT_SIZE, E)          linear1.weight.T
    b1_ref,       # (1, E)
    wihh_ref,     # (E+H, 4H)                 fused, gate cols [i|f|o|g]
    b_lstm_ref,   # (1, 4H)                   bias_ih + bias_hh, re-ordered
    w2_ref,       # (H, OUTPUT_SIZE)          linear2.weight.T
    b2_ref,       # (1, OUTPUT_SIZE)
    packed_ref,   # (TB, OUTPUT_SIZE + 2H)    [out | h_new | c_new]
):
    out, h_new, c_new = _decoder_step(
        x_ref[...], h_ref[...], c_ref[...],
        w1_ref[...], b1_ref[...], wihh_ref[...], b_lstm_ref[...],
        w2_ref[...], b2_ref[...])
    packed_ref[...] = jnp.concatenate([out, h_new, c_new], axis=-1)


def _num_batch_tiles(B):
    """1 tile on single-TC chips (v5e/v6e); 2 tiles on 2-TC chips (v7x)."""
    try:
        kind = jax.devices()[0].device_kind.lower()
    except Exception:
        kind = ""
    two_tc = "v7" in kind or "7x" in kind
    if two_tc and B % 16 == 0:   # keep blocks (8,128)-aligned on the sublane axis
        return 2
    return 1


@jax.jit
def decoder_rnn_forward(x, hidden, params):
    """Pallas forward pass. Returns (output, (h_new, c_new)) like the module."""
    h0, c0 = hidden
    B = x.shape[0]
    H = HIDDEN_SIZE
    n_tiles = _num_batch_tiles(B)
    TB = B // n_tiles

    def batch_spec(feat):
        return pl.BlockSpec((TB, feat), lambda i: (i, 0))

    def full_spec(arr):
        # Weights: constant block index -> stay resident in VMEM across grid.
        return pl.BlockSpec(arr.shape, lambda i: (0, 0))

    in_specs = [
        batch_spec(OUTPUT_SIZE), batch_spec(H), batch_spec(H),
        full_spec(params["w1_t"]), full_spec(params["b1"]),
        full_spec(params["wihh"]), full_spec(params["b_lstm"]),
        full_spec(params["w2_t"]), full_spec(params["b2"]),
    ]
    out_specs = batch_spec(OUTPUT_SIZE + 2 * H)

    packed = pl.pallas_call(
        _decoder_step_kernel,
        out_shape=jax.ShapeDtypeStruct((B, OUTPUT_SIZE + 2 * H), jnp.float32),
        grid=(n_tiles,),
        in_specs=in_specs,
        out_specs=out_specs,
        compiler_params=pltpu.CompilerParams(
            dimension_semantics=("parallel",)),
    )(x, h0, c0,
      params["w1_t"], params["b1"], params["wihh"], params["b_lstm"],
      params["w2_t"], params["b2"])

    out = packed[:, :OUTPUT_SIZE]
    h_new = packed[:, OUTPUT_SIZE:OUTPUT_SIZE + H]
    c_new = packed[:, OUTPUT_SIZE + H:]
    return out, (h_new, c_new)


# ----------------------------------------------------------------------------
# Fused autoregressive decode: T steps, ONE grid step.
# Logits buffer is VMEM-resident and written back once; linear2 is folded off
# the recurrent chain (emb_{t+1} = relu(h_t @ W_fold + b_fold)).
# ----------------------------------------------------------------------------
def _decoder_rollout_kernel(
    x0_ref, h0_ref, c0_ref,
    w1_ref, b1_ref, wihh_ref, b_lstm_ref, w2_ref, b2_ref,
    wfold_ref, bfold_ref,
    outs_ref,    # (T, B, OUTPUT_SIZE)  whole buffer, VMEM-resident
    hc_ref,      # (B, 2H)              final [h | c], written once
):
    H = HIDDEN_SIZE
    T = outs_ref.shape[0]
    B = x0_ref.shape[0]

    w1 = w1_ref[...]
    b1 = b1_ref[...]
    wihh = wihh_ref[...]
    b_lstm = b_lstm_ref[...]
    w2 = w2_ref[...]
    b2 = b2_ref[...]
    wfold = wfold_ref[...]
    bfold = bfold_ref[...]

    h = h0_ref[...]
    c = c0_ref[...]

    # Step 0 embedding from the external input (exact module path).
    x0 = x0_ref[...]
    emb = jnp.broadcast_to(b1, (B, b1.shape[-1]))
    for k in range(OUTPUT_SIZE):
        emb = emb + x0[:, k:k + 1] * w1[k:k + 1, :]
    emb = jnp.maximum(emb, 0.0)

    for t in range(T):
        # Fused gate matmul on the serial chain.
        xh = jnp.concatenate([emb, h], axis=-1)                  # (B, E+H)
        gates = jnp.dot(xh, wihh, preferred_element_type=jnp.float32) + b_lstm
        sig = jax.nn.sigmoid(gates[:, :3 * H])
        g_gate = jnp.tanh(gates[:, 3 * H:])
        i_gate = sig[:, 0 * H:1 * H]
        f_gate = sig[:, 1 * H:2 * H]
        o_gate = sig[:, 2 * H:3 * H]
        c = f_gate * c + i_gate * g_gate
        h = o_gate * jnp.tanh(c)

        # Logits for this step: off the recurrent feedback path.
        outs_ref[t] = jnp.dot(h, w2, preferred_element_type=jnp.float32) + b2

        # Next-step embedding with linear2 folded into linear1:
        #   relu(linear1(linear2(h))) == relu(h @ (w2_t @ w1_t) + (b2 @ w1_t + b1))
        if t + 1 < T:
            emb = jnp.maximum(
                jnp.dot(h, wfold, preferred_element_type=jnp.float32) + bfold,
                0.0)

    hc_ref[...] = jnp.concatenate([h, c], axis=-1)


@functools.partial(jax.jit, static_argnames=("num_steps",))
def decoder_rnn_decode_fused(x0, hidden, params, num_steps):
    """Run `num_steps` decoder steps (output fed back as input) in one kernel.

    Returns (outputs[T, B, OUTPUT_SIZE], (h_final, c_final)).
    """
    h0, c0 = hidden
    B = x0.shape[0]
    H = HIDDEN_SIZE

    # Fold linear2 into linear1 for the feedback path (tiny, done at trace).
    wfold = params["w2_t"] @ params["w1_t"]                      # (H, E)
    bfold = params["b2"] @ params["w1_t"] + params["b1"]         # (1, E)

    def full2(arr):
        return pl.BlockSpec(arr.shape, lambda i: (0, 0))

    in_specs = [
        full2(x0), full2(h0), full2(c0),
        full2(params["w1_t"]), full2(params["b1"]),
        full2(params["wihh"]), full2(params["b_lstm"]),
        full2(params["w2_t"]), full2(params["b2"]),
        full2(wfold), full2(bfold),
    ]
    out_specs = (
        pl.BlockSpec((num_steps, B, OUTPUT_SIZE), lambda i: (0, 0, 0)),
        pl.BlockSpec((B, 2 * H), lambda i: (0, 0)),
    )

    outs, hc = pl.pallas_call(
        _decoder_rollout_kernel,
        out_shape=(
            jax.ShapeDtypeStruct((num_steps, B, OUTPUT_SIZE), jnp.float32),
            jax.ShapeDtypeStruct((B, 2 * H), jnp.float32),
        ),
        grid=(1,),
        in_specs=in_specs,
        out_specs=out_specs,
        compiler_params=pltpu.CompilerParams(
            dimension_semantics=("arbitrary",)),
    )(x0, h0, c0,
      params["w1_t"], params["b1"], params["wihh"], params["b_lstm"],
      params["w2_t"], params["b2"], wfold, bfold)

    return outs, (hc[:, :H], hc[:, H:])


# ----------------------------------------------------------------------------
# Parameters (PyTorch-compatible shapes, pre-fused / pre-transposed for TPU).
# ----------------------------------------------------------------------------
def init_params(key):
    ks = jax.random.split(key, 8)
    u = lambda k, shape, bound: jax.random.uniform(
        k, shape, jnp.float32, minval=-bound, maxval=bound)

    # linear1: weight (E, OUT), bias (E,)
    w1 = u(ks[0], (EMBEDDING_SIZE, OUTPUT_SIZE), 1.0 / OUTPUT_SIZE ** 0.5)
    b1 = u(ks[1], (EMBEDDING_SIZE,), 1.0 / OUTPUT_SIZE ** 0.5)
    # lstm1: weight_ih (4H, E), weight_hh (4H, H), biases (4H,), torch order i,f,g,o
    bound = 1.0 / HIDDEN_SIZE ** 0.5
    w_ih = u(ks[2], (4 * HIDDEN_SIZE, EMBEDDING_SIZE), bound)
    w_hh = u(ks[3], (4 * HIDDEN_SIZE, HIDDEN_SIZE), bound)
    b_ih = u(ks[4], (4 * HIDDEN_SIZE,), bound)
    b_hh = u(ks[5], (4 * HIDDEN_SIZE,), bound)
    # linear2: weight (OUT, H), bias (OUT,)
    w2 = u(ks[6], (OUTPUT_SIZE, HIDDEN_SIZE), 1.0 / HIDDEN_SIZE ** 0.5)
    b2 = u(ks[7], (OUTPUT_SIZE,), 1.0 / HIDDEN_SIZE ** 0.5)

    H = HIDDEN_SIZE
    # Fuse: [W_ih^T ; W_hh^T] -> (E+H, 4H); columns are torch order [i|f|g|o].
    wihh = jnp.concatenate([w_ih.T, w_hh.T], axis=0)
    b_lstm = b_ih + b_hh
    # Re-order gate columns to [i|f|o|g] (contiguous sigmoid block, tanh last).
    perm = jnp.concatenate([
        jnp.arange(0, 2 * H),       # i, f
        jnp.arange(3 * H, 4 * H),   # o
        jnp.arange(2 * H, 3 * H),   # g
    ])
    wihh = wihh[:, perm]
    b_lstm = b_lstm[perm]

    return {
        "w1_t": w1.T, "b1": b1[None, :],
        "wihh": wihh, "b_lstm": b_lstm[None, :],
        "w2_t": w2.T, "b2": b2[None, :],
    }


# ----------------------------------------------------------------------------
# Pure-JAX reference (torch LSTMCell semantics, on the pre-fused params).
# ----------------------------------------------------------------------------
def decoder_rnn_reference(x, hidden, params):
    h0, c0 = hidden
    H = HIDDEN_SIZE
    emb = jax.nn.relu(x @ params["w1_t"] + params["b1"])
    gates = jnp.concatenate([emb, h0], axis=-1) @ params["wihh"] + params["b_lstm"]
    # columns are [i | f | o | g]
    i = jax.nn.sigmoid(gates[:, 0 * H:1 * H])
    f = jax.nn.sigmoid(gates[:, 1 * H:2 * H])
    o = jax.nn.sigmoid(gates[:, 2 * H:3 * H])
    g = jnp.tanh(gates[:, 3 * H:4 * H])
    c_new = f * c0 + i * g
    h_new = o * jnp.tanh(c_new)
    out = h_new @ params["w2_t"] + params["b2"]
    return out, (h_new, c_new)


if __name__ == "__main__":
    key = jax.random.PRNGKey(0)
    k_param, k_x, k_h, k_c = jax.random.split(key, 4)

    batch = 4
    num_steps = 6
    params = init_params(k_param)
    x = jax.random.normal(k_x, (batch, OUTPUT_SIZE), jnp.float32)
    h0 = jax.random.normal(k_h, (batch, HIDDEN_SIZE), jnp.float32)
    c0 = jax.random.normal(k_c, (batch, HIDDEN_SIZE), jnp.float32)

    # --- single step (matches DecoderRNN.forward) ---
    out, (h_new, c_new) = decoder_rnn_forward(x, (h0, c0), params)
    jax.block_until_ready((out, h_new, c_new))

    ref_out, (ref_h, ref_c) = decoder_rnn_reference(x, (h0, c0), params)
    assert jnp.allclose(out, ref_out, atol=1e-4, rtol=1e-4)
    assert jnp.allclose(h_new, ref_h, atol=1e-4, rtol=1e-4)
    assert jnp.allclose(c_new, ref_c, atol=1e-4, rtol=1e-4)

    # --- fused autoregressive decode (T steps, one grid step) ---
    outs, (h_fin, c_fin) = decoder_rnn_decode_fused(x, (h0, c0), params, num_steps)
    jax.block_until_ready((outs, h_fin, c_fin))

    rx, rh, rc = x, h0, c0
    ref_outs = []
    for _ in range(num_steps):
        rx, (rh, rc) = decoder_rnn_reference(rx, (rh, rc), params)
        ref_outs.append(rx)
    ref_outs = jnp.stack(ref_outs, axis=0)
    assert jnp.allclose(outs, ref_outs, atol=1e-4, rtol=1e-4)
    assert jnp.allclose(h_fin, rh, atol=1e-4, rtol=1e-4)
    assert jnp.allclose(c_fin, rc, atol=1e-4, rtol=1e-4)

    print("KERNEL_OK")
</pallas_src>

<mosaic_0001>
module attributes {stable_mosaic.version = 11 : i64} {
  func.func @_decoder_step_kernel(%arg0: i32, %arg1: memref<4x2xf32, #tpu.memory_space<vmem>>, %arg2: memref<4x16xf32, #tpu.memory_space<vmem>>, %arg3: memref<4x16xf32, #tpu.memory_space<vmem>>, %arg4: memref<2x8xf32, #tpu.memory_space<vmem>>, %arg5: memref<1x8xf32, #tpu.memory_space<vmem>>, %arg6: memref<24x64xf32, #tpu.memory_space<vmem>>, %arg7: memref<1x64xf32, #tpu.memory_space<vmem>>, %arg8: memref<16x2xf32, #tpu.memory_space<vmem>>, %arg9: memref<1x2xf32, #tpu.memory_space<vmem>>, %arg10: memref<4x34xf32, #tpu.memory_space<vmem>>) attributes {dimension_semantics = [#tpu.dimension_semantics<parallel>], iteration_bounds = array<i64: 1>, scalar_prefetch = 0 : i64, scratch_operands = 0 : i64, tpu.core_type = #tpu.core_type<tc>, window_params = [{transform_indices = @transform_0, window_bounds = array<i64: 4, 2>}, {transform_indices = @transform_1, window_bounds = array<i64: 4, 16>}, {transform_indices = @transform_2, window_bounds = array<i64: 4, 16>}, {pipeline_mode = #tpu.pipeline_mode<synchronous>, transform_indices = @transform_3, window_bounds = array<i64: 2, 8>}, {pipeline_mode = #tpu.pipeline_mode<synchronous>, transform_indices = @transform_4, window_bounds = array<i64: 1, 8>}, {pipeline_mode = #tpu.pipeline_mode<synchronous>, transform_indices = @transform_5, window_bounds = array<i64: 24, 64>}, {pipeline_mode = #tpu.pipeline_mode<synchronous>, transform_indices = @transform_6, window_bounds = array<i64: 1, 64>}, {pipeline_mode = #tpu.pipeline_mode<synchronous>, transform_indices = @transform_7, window_bounds = array<i64: 16, 2>}, {pipeline_mode = #tpu.pipeline_mode<synchronous>, transform_indices = @transform_8, window_bounds = array<i64: 1, 2>}, {transform_indices = @transform_9, window_bounds = array<i64: 4, 34>}]} {
    %c0 = arith.constant 0 : index
    %c0_0 = arith.constant 0 : index
    %0 = vector.load %arg1[%c0, %c0_0] : memref<4x2xf32, #tpu.memory_space<vmem>>, vector<4x2xf32>
    %c0_1 = arith.constant 0 : index
    %c0_2 = arith.constant 0 : index
    %1 = vector.load %arg2[%c0_1, %c0_2] : memref<4x16xf32, #tpu.memory_space<vmem>>, vector<4x16xf32>
    %c0_3 = arith.constant 0 : index
    %c0_4 = arith.constant 0 : index
    %2 = vector.load %arg3[%c0_3, %c0_4] : memref<4x16xf32, #tpu.memory_space<vmem>>, vector<4x16xf32>
    %c0_5 = arith.constant 0 : index
    %c0_6 = arith.constant 0 : index
    %3 = vector.load %arg4[%c0_5, %c0_6] : memref<2x8xf32, #tpu.memory_space<vmem>>, vector<2x8xf32>
    %c0_7 = arith.constant 0 : index
    %c0_8 = arith.constant 0 : index
    %4 = vector.load %arg5[%c0_7, %c0_8] : memref<1x8xf32, #tpu.memory_space<vmem>>, vector<1x8xf32>
    %c0_9 = arith.constant 0 : index
    %c0_10 = arith.constant 0 : index
    %5 = vector.load %arg6[%c0_9, %c0_10] : memref<24x64xf32, #tpu.memory_space<vmem>>, vector<24x64xf32>
    %c0_11 = arith.constant 0 : index
    %c0_12 = arith.constant 0 : index
    %6 = vector.load %arg7[%c0_11, %c0_12] : memref<1x64xf32, #tpu.memory_space<vmem>>, vector<1x64xf32>
    %c0_13 = arith.constant 0 : index
    %c0_14 = arith.constant 0 : index
    %7 = vector.load %arg8[%c0_13, %c0_14] : memref<16x2xf32, #tpu.memory_space<vmem>>, vector<16x2xf32>
    %c0_15 = arith.constant 0 : index
    %c0_16 = arith.constant 0 : index
    %8 = vector.load %arg9[%c0_15, %c0_16] : memref<1x2xf32, #tpu.memory_space<vmem>>, vector<1x2xf32>
    %9 = vector.shape_cast %4 : vector<1x8xf32> to vector<1x8xf32>
    %10 = vector.broadcast %9 : vector<1x8xf32> to vector<4x8xf32>
    %11 = vector.extract_strided_slice %0 {offsets = [0, 0], sizes = [4, 1], strides = [1, 1]} : vector<4x2xf32> to vector<4x1xf32>
    %12 = vector.extract_strided_slice %3 {offsets = [0, 0], sizes = [1, 8], strides = [1, 1]} : vector<2x8xf32> to vector<1x8xf32>
    %13 = vector.broadcast %11 : vector<4x1xf32> to vector<4x8xf32>
    %14 = vector.broadcast %12 : vector<1x8xf32> to vector<4x8xf32>
    %15 = arith.mulf %13, %14 : vector<4x8xf32>
    %16 = arith.addf %10, %15 : vector<4x8xf32>
    %17 = vector.extract_strided_slice %0 {offsets = [0, 1], sizes = [4, 1], strides = [1, 1]} : vector<4x2xf32> to vector<4x1xf32>
    %18 = vector.extract_strided_slice %3 {offsets = [1, 0], sizes = [1, 8], strides = [1, 1]} : vector<2x8xf32> to vector<1x8xf32>
    %19 = vector.broadcast %17 : vector<4x1xf32> to vector<4x8xf32>
    %20 = vector.broadcast %18 : vector<1x8xf32> to vector<4x8xf32>
    %21 = arith.mulf %19, %20 : vector<4x8xf32>
    %22 = arith.addf %16, %21 : vector<4x8xf32>
    %cst = arith.constant 0.000000e+00 : f32
    %23 = vector.broadcast %cst : f32 to vector<4x8xf32>
    %24 = arith.maximumf %22, %23 : vector<4x8xf32>
    %25 = tpu.concatenate %24, %1 in 1 : vector<4x8xf32>, vector<4x16xf32> -> vector<4x24xf32>
    %cst_17 = arith.constant dense<0.000000e+00> : vector<4x64xf32>
    %26 = tpu.matmul %25, %5, %cst_17 {dimension_numbers = #tpu.dot_dimension_numbers<[1], [0], [0], [1], [0, 0, 1, 1], [], []>} : vector<4x24xf32>, vector<24x64xf32>, vector<4x64xf32> -> vector<4x64xf32>
    %27 = vector.broadcast %6 : vector<1x64xf32> to vector<4x64xf32>
    %28 = arith.addf %26, %27 : vector<4x64xf32>
    %29 = vector.extract_strided_slice %28 {offsets = [0, 0], sizes = [4, 48], strides = [1, 1]} : vector<4x64xf32> to vector<4x48xf32>
    %30 = arith.negf %29 : vector<4x48xf32>
    %31 = math.exp %30 : vector<4x48xf32>
    %cst_18 = arith.constant 1.000000e+00 : f32
    %32 = vector.broadcast %cst_18 : f32 to vector<4x48xf32>
    %33 = arith.addf %32, %31 : vector<4x48xf32>
    %34 = arith.divf %32, %33 : vector<4x48xf32>
    %35 = vector.extract_strided_slice %28 {offsets = [0, 48], sizes = [4, 16], strides = [1, 1]} : vector<4x64xf32> to vector<4x16xf32>
    %36 = math.tanh %35 : vector<4x16xf32>
    %37 = vector.extract_strided_slice %34 {offsets = [0, 0], sizes = [4, 16], strides = [1, 1]} : vector<4x48xf32> to vector<4x16xf32>
    %38 = vector.extract_strided_slice %34 {offsets = [0, 16], sizes = [4, 16], strides = [1, 1]} : vector<4x48xf32> to vector<4x16xf32>
    %39 = vector.extract_strided_slice %34 {offsets = [0, 32], sizes = [4, 16], strides = [1, 1]} : vector<4x48xf32> to vector<4x16xf32>
    %40 = arith.mulf %38, %2 : vector<4x16xf32>
    %41 = arith.mulf %37, %36 : vector<4x16xf32>
    %42 = arith.addf %40, %41 : vector<4x16xf32>
    %43 = math.tanh %42 : vector<4x16xf32>
    %44 = arith.mulf %39, %43 : vector<4x16xf32>
    %cst_19 = arith.constant dense<0.000000e+00> : vector<4x2xf32>
    %45 = tpu.matmul %44, %7, %cst_19 {dimension_numbers = #tpu.dot_dimension_numbers<[1], [0], [0], [1], [0, 0, 1, 1], [], []>} : vector<4x16xf32>, vector<16x2xf32>, vector<4x2xf32> -> vector<4x2xf32>
    %46 = vector.broadcast %8 : vector<1x2xf32> to vector<4x2xf32>
    %47 = arith.addf %45, %46 : vector<4x2xf32>
    %48 = tpu.concatenate %47, %44, %42 in 1 : vector<4x2xf32>, vector<4x16xf32>, vector<4x16xf32> -> vector<4x34xf32>
    %c0_20 = arith.constant 0 : index
    %c0_21 = arith.constant 0 : index
    %49 = vector.load %arg10[%c0_20, %c0_21] : memref<4x34xf32, #tpu.memory_space<vmem>>, vector<4x34xf32>
    tpu.vector_store %arg10[%c0_20, %c0_21], %48 {strides = array<i32>} : memref<4x34xf32, #tpu.memory_space<vmem>>, vector<4x34xf32>,
    return
  }
  func.func @transform_0(%arg0: i32) -> (i32, i32) {
    %c0_i32 = arith.constant 0 : i32
    %c0_i32_0 = arith.constant 0 : i32
    return %arg0, %c0_i32 : i32, i32
  }
  func.func @transform_1(%arg0: i32) -> (i32, i32) {
    %c0_i32 = arith.constant 0 : i32
    %c0_i32_0 = arith.constant 0 : i32
    return %arg0, %c0_i32 : i32, i32
  }
  func.func @transform_2(%arg0: i32) -> (i32, i32) {
    %c0_i32 = arith.constant 0 : i32
    %c0_i32_0 = arith.constant 0 : i32
    return %arg0, %c0_i32 : i32, i32
  }
  func.func @transform_3(%arg0: i32) -> (i32, i32) {
    %c0_i32 = arith.constant 0 : i32
    %c0_i32_0 = arith.constant 0 : i32
    %c0_i32_1 = arith.constant 0 : i32
    return %c0_i32, %c0_i32_0 : i32, i32
  }
  func.func @transform_4(%arg0: i32) -> (i32, i32) {
    %c0_i32 = arith.constant 0 : i32
    %c0_i32_0 = arith.constant 0 : i32
    %c0_i32_1 = arith.constant 0 : i32
    return %c0_i32, %c0_i32_0 : i32, i32
  }
  func.func @transform_5(%arg0: i32) -> (i32, i32) {
    %c0_i32 = arith.constant 0 : i32
    %c0_i32_0 = arith.constant 0 : i32
    %c0_i32_1 = arith.constant 0 : i32
    return %c0_i32, %c0_i32_0 : i32, i32
  }
  func.func @transform_6(%arg0: i32) -> (i32, i32) {
    %c0_i32 = arith.constant 0 : i32
    %c0_i32_0 = arith.constant 0 : i32
    %c0_i32_1 = arith.constant 0 : i32
    return %c0_i32, %c0_i32_0 : i32, i32
  }
  func.func @transform_7(%arg0: i32) -> (i32, i32) {
    %c0_i32 = arith.constant 0 : i32
    %c0_i32_0 = arith.constant 0 : i32
    %c0_i32_1 = arith.constant 0 : i32
    return %c0_i32, %c0_i32_0 : i32, i32
  }
  func.func @transform_8(%arg0: i32) -> (i32, i32) {
    %c0_i32 = arith.constant 0 : i32
    %c0_i32_0 = arith.constant 0 : i32
    %c0_i32_1 = arith.constant 0 : i32
    return %c0_i32, %c0_i32_0 : i32, i32
  }
  func.func @transform_9(%arg0: i32) -> (i32, i32) {
    %c0_i32 = arith.constant 0 : i32
    %c0_i32_0 = arith.constant 0 : i32
    return %arg0, %c0_i32 : i32, i32
  }
}

</mosaic_0001>

<llo_original>
// kernel: decoder_rnn_forward.1
$region0: #{decoder_rnn_forward.1}
  #allocation0 [shape = 'u32[]', space=smem, size = 0x4, offset = 0x4, fixed_abs, tag = 'smem constant byte address 0x4 - core index']
  #allocation1 [shape = 'u32[144,128]{1,0:T(1,128)}', space=vmem, size = 0x12000, scoped, tag = 'internal scratch']
  %s0 = inlined_call_operand.vmem [shape: f32[4,2], index: 0, kind: input, shape index: {}]
  %s1 = inlined_call_operand.vmem [shape: f32[4,16], index: 1, kind: input, shape index: {}]
  %s2 = inlined_call_operand.vmem [shape: f32[4,16], index: 2, kind: input, shape index: {}]
  %s3 = inlined_call_operand.vmem [shape: f32[2,8], index: 3, kind: input, shape index: {}]
  %s4 = inlined_call_operand.vmem [shape: f32[1,8], index: 4, kind: input, shape index: {}]
  %s5 = inlined_call_operand.vmem [shape: f32[24,64], index: 5, kind: input, shape index: {}]
  %s6 = inlined_call_operand.vmem [shape: f32[1,64], index: 6, kind: input, shape index: {}]
  %s7 = inlined_call_operand.vmem [shape: f32[16,2], index: 7, kind: input, shape index: {}]
  %s8 = inlined_call_operand.vmem [shape: f32[1,2], index: 8, kind: input, shape index: {}]
  %s9 = inlined_call_operand.vmem [shape: f32[4,34], index: 9, kind: output, shape index: {}]
  %s10 = sld [smem:[#allocation0]]
  $region46: #{decoder_rnn_forward.1} parent=0
    _
  %s12 = ssub.s32 1, %s10
  %s13 = scalar_select 0, %s12, %s10
  // Predicated region
  $region2: #{decoder_rnn_forward.1} parent=0 // pred_check
    _
  $region3: #{decoder_rnn_forward.1} parent=0 // pred_check_branch
    %15 = sbr.rel (0) target = $region5
  $region4: #{decoder_rnn_forward.1} parent=0 // pred_region
    _
  $region5: #{decoder_rnn_forward.1} parent=0 // pred_fallthru
    _
  // Predicated region
  $region6: #{decoder_rnn_forward.1} parent=0 // pred_check
    _
  $region7: #{decoder_rnn_forward.1} parent=0 // pred_check_branch
    %17 = sbr.rel (0) target = $region9
  $region8: #{decoder_rnn_forward.1} parent=0 // pred_region
    _
  $region9: #{decoder_rnn_forward.1} parent=0 // pred_fallthru
    _
  // Predicated region
  $region10: #{decoder_rnn_forward.1} parent=0 // pred_check
    _
  $region11: #{decoder_rnn_forward.1} parent=0 // pred_check_branch
    %19 = sbr.rel (0) target = $region13
  $region12: #{decoder_rnn_forward.1} parent=0 // pred_region
    _
  $region13: #{decoder_rnn_forward.1} parent=0 // pred_fallthru
    _
  // Predicated region
  $region14: #{decoder_rnn_forward.1} parent=0 // pred_check
    _
  $region15: #{decoder_rnn_forward.1} parent=0 // pred_check_branch
    %21 = sbr.rel (0) target = $region17
  $region16: #{decoder_rnn_forward.1} parent=0 // pred_region
    _
  $region17: #{decoder_rnn_forward.1} parent=0 // pred_fallthru
    _
  // Predicated region
  $region18: #{decoder_rnn_forward.1} parent=0 // pred_check
    _
  $region19: #{decoder_rnn_forward.1} parent=0 // pred_check_branch
    %23 = sbr.rel (0) target = $region21
  $region20: #{decoder_rnn_forward.1} parent=0 // pred_region
    _
  $region21: #{decoder_rnn_forward.1} parent=0 // pred_fallthru
    _
  // Predicated region
  $region22: #{decoder_rnn_forward.1} parent=0 // pred_check
    _
  $region23: #{decoder_rnn_forward.1} parent=0 // pred_check_branch
    %25 = sbr.rel (0) target = $region25
  $region24: #{decoder_rnn_forward.1} parent=0 // pred_region
    _
  $region25: #{decoder_rnn_forward.1} parent=0 // pred_fallthru
    _
  // Predicated region
  $region26: #{decoder_rnn_forward.1} parent=0 // pred_check
    _
  $region27: #{decoder_rnn_forward.1} parent=0 // pred_check_branch
    %27 = sbr.rel (0) target = $region29
  $region28: #{decoder_rnn_forward.1} parent=0 // pred_region
    _
  $region29: #{decoder_rnn_forward.1} parent=0 // pred_fallthru
    _
  // Predicated region
  $region30: #{decoder_rnn_forward.1} parent=0 // pred_check
    _
  $region31: #{decoder_rnn_forward.1} parent=0 // pred_check_branch
    %29 = sbr.rel (0) target = $region33
  $region32: #{decoder_rnn_forward.1} parent=0 // pred_region
    _
  $region33: #{decoder_rnn_forward.1} parent=0 // pred_fallthru
    _
  // Predicated region
  $region34: #{decoder_rnn_forward.1} parent=0 // pred_check
    _
  $region35: #{decoder_rnn_forward.1} parent=0 // pred_check_branch
    %31 = sbr.rel (0) target = $region37
  $region36: #{decoder_rnn_forward.1} parent=0 // pred_region
    _
  $region37: #{decoder_rnn_forward.1} parent=0 // pred_fallthru
    _
  %v32 = vld [vmem:[%s0] sm:$0xf]
  %v33 = vld [vmem:[%s1] sm:$0xf]
  %v34 = vld [vmem:[%s2] sm:$0xf]
  %v35 = vld [vmem:[%s3] sm:$0x3]
  %v36 = vld [vmem:[%s4] sm:$0x1]
  %v37 = vld [vmem:[%s5] sm:$0xff]
  %v38 = vld [vmem:[%s5 + $0x8] sm:$0xff]
  %v39 = vld [vmem:[%s5 + $0x10] sm:$0xff]
  %v40 = vld [vmem:[%s6] sm:$0x1]
  %v41 = vld [vmem:[%s7] sm:$0xff]
  %v42 = vld [vmem:[%s7 + $0x8] sm:$0xff]
  %v43 = vld [vmem:[%s8] sm:$0x1]
  %v45 = vlaneseq
  %v46 = vshrl.u32 %v45, 7
  %v47 = vsub.s32 0, %v46
  %v48 = vrot.slane %v36, %v47
  %51 = vset.pattern.permute.xlu0 0
  %52 = vperm.xlu0 %51, %v32
  %v53 = vpop.permute.xlu0 %52
  %v55 = vlaneseq
  %v56 = vshrl.u32 %v55, 7
  %v57 = vsub.s32 0, %v56
  %v58 = vrot.slane %v35, %v57
  %v59 = vmul.f32 %v53, %v58
  %v60 = vadd.f32 %v48, %v59
  %61 = vset.pattern.permute.xlu0 1
  %62 = vperm.xlu0 %61, %v32
  %v63 = vpop.permute.xlu0 %62
  %v65 = vlaneseq
  %v66 = vshrl.u32 %v65, 7
  %v67 = vsub.s32 1, %v66
  %v68 = vrot.slane %v35, %v67
  %v69 = vmul.f32 %v63, %v68
  %v70 = vadd.f32 %v60, %v69
  %v71 = vmax.f32 %v70, 0.0
  %73 = vrot.lane.b32.xlu0 %v33, 8
  %v74 = vpop.permute.xlu0 %73
  %vm76 = vcmask 64512
  %v77 = vsel %vm76, %v71, %v74
  %v79 = vlaneseq
  %v80 = vshrl.u32 %v79, 7
  %v81 = vsub.s32 0, %v80
  %v82 = vrot.slane %v40, %v81
  %vm84 = vcmask 195584
  %v86 = vsel %vm84, %v77, 0
  %88 = vmatprep.subr.mxu0 0.0
  %89 = vmatpush1.msra.mxu0 %v37
  %90 = vmatprep.subr.mxu0 0.0
  %91 = vmatpush1.msra.mxu0 %v38
  %92 = vmatprep.subr.mxu0 0.0
  %93 = vmatpush1.msra.mxu0 %v39
  %94 = vmatprep.subr.mxu0 0.0
  %95 = vmatpush1.msra.mxu0 0.0
  %96 = vmatprep.subr.mxu0 0.0
  %97 = vmatpush1.msra.mxu0 0.0
  %98 = vmatprep.subr.mxu0 0.0
  %99 = vmatpush1.msra.mxu0 0.0
  %100 = vmatprep.subr.mxu0 0.0
  %101 = vmatpush1.msra.mxu0 0.0
  %102 = vmatprep.subr.mxu0 0.0
  %103 = vmatpush1.msra.mxu0 0.0
  %104 = vmatprep.subr.mxu0 0.0
  %105 = vmatpush1.msra.mxu0 0.0
  %106 = vmatprep.subr.mxu0 0.0
  %107 = vmatpush1.msra.mxu0 0.0
  %108 = vmatprep.subr.mxu0 0.0
  %109 = vmatpush1.msra.mxu0 0.0
  %110 = vmatprep.subr.mxu0 0.0
  %111 = vmatpush1.msra.mxu0 0.0
  %112 = vmatprep.subr.mxu0 0.0
  %113 = vmatpush1.msra.mxu0 0.0
  %114 = vmatprep.subr.mxu0 0.0
  %115 = vmatpush1.msra.mxu0 0.0
  %116 = vmatprep.subr.mxu0 0.0
  %117 = vmatpush1.msra.mxu0 0.0
  %118 = vmatprep.subr.mxu0 0.0
  %119 = vmatpush1.msra.mxu0 0.0
  %120 = vmatprep.subr.mxu0 0.0
  %121 = vmatpush1.msra.mxu0 0.0
  %122 = vmatprep.subr.mxu0 0.0
  %123 = vmatpush1.msra.mxu0 0.0
  %124 = vmatprep.subr.mxu0 0.0
  %125 = vmatpush1.msra.mxu0 0.0
  %126 = vmatprep.subr.mxu0 0.0
  %127 = vmatpush1.msra.mxu0 0.0
  %128 = vmatprep.subr.mxu0 0.0
  %129 = vmatpush1.msra.mxu0 0.0
  %130 = vmatprep.subr.mxu0 0.0
  %131 = vmatpush1.msra.mxu0 0.0
  %132 = vmatprep.subr.mxu0 0.0
  %133 = vmatpush1.msra.mxu0 0.0
  %134 = vmatprep.subr.mxu0 0.0
  %135 = vmatpush1.msra.mxu0 0.0
  %136 = vmatprep.subr.mxu0 0.0
  %137 = vmatpush1.msra.mxu0 0.0
  %138 = vmatprep.subr.mxu0 0.0
  %139 = vmatpush1.msra.mxu0 0.0
  %140 = vmatprep.subr.mxu0 0.0
  %141 = vmatpush1.msra.mxu0 0.0
  %142 = vmatprep.subr.mxu0 0.0
  %143 = vmatpush1.msra.mxu0 0.0
  %144 = vmatprep.subr.mxu0 0.0
  %145 = vmatpush1.msra.mxu0 0.0
  %146 = vmatprep.subr.mxu0 0.0
  %147 = vmatpush1.msra.mxu0 0.0
  %148 = vmatprep.subr.mxu0 0.0
  %149 = vmatpush1.msra.mxu0 0.0
  %150 = vmatprep.subr.mxu0 0.0
  %151 = vmatpush1.msra.mxu0 0.0
  %152 = vmatprep.mubr.f32.mxu0 0.0
  %153 = vmatmul.mubr.f32.gmra.mrb[0].mxu0 %v86
  %v154 = vpop.f32.mrb[0].mxu0
  %v155 = vadd.f32 %v82, %v154
  %v156 = vpop.f32.mrb[0].mxu0
  %157 = vdwg.mxu0
  %v158 = vxor.u32 %v155, 2147483648
  %v159 = vmul.f32 %v158, 1.442695
  %v160 = vpow.pop %v159
  %v161 = vadd.f32 %v160, 1.0
  %v162 = vrcp.pop %v161
  %v163 = vmul.f32 1.0, %v162
  %v164 = vtanh.pop %v155
  %166 = vrot.lane.b32.xlu0 %v34, 16
  %v167 = vpop.permute.xlu0 %166
  %v169 = vmul.f32 %v163, %v167
  %171 = vrot.lane.b32.xlu0 %v164, 80
  %v172 = vpop.permute.xlu0 %171
  %v174 = vmul.f32 %v163, %v172
  %176 = vrot.lane.b32.xlu0 %v174, 16
  %v177 = vpop.permute.xlu0 %176
  %v179 = vadd.f32 %v169, %v177
  %v180 = vtanh.pop %v179
  %182 = vrot.lane.b32.xlu0 %v180, 16
  %v183 = vpop.permute.xlu0 %182
  %v185 = vmul.f32 %v163, %v183
  %v187 = vlaneseq
  %v188 = vshrl.u32 %v187, 7
  %v189 = vsub.s32 0, %v188
  %v190 = vrot.slane %v43, %v189
  %193 = vrot.lane.b32.xlu0 %v185, 96
  %v194 = vpop.permute.xlu0 %193
  %vm195 = vcmask 130048
  %v196 = vsel %vm195, %v194, 0
  %198 = vmatprep.subr.mxu0 0.0
  %199 = vmatpush1.msra.mxu0 %v41
  %200 = vmatprep.subr.mxu0 0.0
  %201 = vmatpush1.msra.mxu0 %v42
  %202 = vmatprep.subr.mxu0 0.0
  %203 = vmatpush1.msra.mxu0 0.0
  %204 = vmatprep.subr.mxu0 0.0
  %205 = vmatpush1.msra.mxu0 0.0
  %206 = vmatprep.subr.mxu0 0.0
  %207 = vmatpush1.msra.mxu0 0.0
  %208 = vmatprep.subr.mxu0 0.0
  %209 = vmatpush1.msra.mxu0 0.0
  %210 = vmatprep.subr.mxu0 0.0
  %211 = vmatpush1.msra.mxu0 0.0
  %212 = vmatprep.subr.mxu0 0.0
  %213 = vmatpush1.msra.mxu0 0.0
  %214 = vmatprep.subr.mxu0 0.0
  %215 = vmatpush1.msra.mxu0 0.0
  %216 = vmatprep.subr.mxu0 0.0
  %217 = vmatpush1.msra.mxu0 0.0
  %218 = vmatprep.subr.mxu0 0.0
  %219 = vmatpush1.msra.mxu0 0.0
  %220 = vmatprep.subr.mxu0 0.0
  %221 = vmatpush1.msra.mxu0 0.0
  %222 = vmatprep.subr.mxu0 0.0
  %223 = vmatpush1.msra.mxu0 0.0
  %224 = vmatprep.subr.mxu0 0.0
  %225 = vmatpush1.msra.mxu0 0.0
  %226 = vmatprep.subr.mxu0 0.0
  %227 = vmatpush1.msra.mxu0 0.0
  %228 = vmatprep.subr.mxu0 0.0
  %229 = vmatpush1.msra.mxu0 0.0
  %230 = vmatprep.subr.mxu0 0.0
  %231 = vmatpush1.msra.mxu0 0.0
  %232 = vmatprep.subr.mxu0 0.0
  %233 = vmatpush1.msra.mxu0 0.0
  %234 = vmatprep.subr.mxu0 0.0
  %235 = vmatpush1.msra.mxu0 0.0
  %236 = vmatprep.subr.mxu0 0.0
  %237 = vmatpush1.msra.mxu0 0.0
  %238 = vmatprep.subr.mxu0 0.0
  %239 = vmatpush1.msra.mxu0 0.0
  %240 = vmatprep.subr.mxu0 0.0
  %241 = vmatpush1.msra.mxu0 0.0
  %242 = vmatprep.subr.mxu0 0.0
  %243 = vmatpush1.msra.mxu0 0.0
  %244 = vmatprep.subr.mxu0 0.0
  %245 = vmatpush1.msra.mxu0 0.0
  %246 = vmatprep.subr.mxu0 0.0
  %247 = vmatpush1.msra.mxu0 0.0
  %248 = vmatprep.subr.mxu0 0.0
  %249 = vmatpush1.msra.mxu0 0.0
  %250 = vmatprep.subr.mxu0 0.0
  %251 = vmatpush1.msra.mxu0 0.0
  %252 = vmatprep.subr.mxu0 0.0
  %253 = vmatpush1.msra.mxu0 0.0
  %254 = vmatprep.subr.mxu0 0.0
  %255 = vmatpush1.msra.mxu0 0.0
  %256 = vmatprep.subr.mxu0 0.0
  %257 = vmatpush1.msra.mxu0 0.0
  %258 = vmatprep.subr.mxu0 0.0
  %259 = vmatpush1.msra.mxu0 0.0
  %260 = vmatprep.subr.mxu0 0.0
  %261 = vmatpush1.msra.mxu0 0.0
  %262 = vmatprep.mubr.f32.mxu0 0.0
  %263 = vmatmul.mubr.f32.gmra.mrb[0].mxu0 %v196
  %v264 = vpop.f32.mrb[0].mxu0
  %v265 = vadd.f32 %v190, %v264
  %v266 = vpop.f32.mrb[0].mxu0
  %267 = vdwg.mxu0
  %268 = vrot.lane.b32.xlu0 %v185, 98
  %v269 = vpop.permute.xlu0 %268
  %272 = vrot.lane.b32.xlu0 %v179, 2
  %v273 = vpop.permute.xlu0 %272
  %vm275 = vcmask 15360
  %v276 = vsel %vm275, %v265, %v269
  %vm277 = vcmask 146432
  %v278 = vsel %vm277, %v276, %v273
  %vm279 = vcmask 273408
  %280 = vst.msk [vmem:[%s9] sm:$0xf] %vm279, %v278
  // Predicated region
  $region38: #{decoder_rnn_forward.1} parent=0 // pred_check
    _
  $region39: #{decoder_rnn_forward.1} parent=0 // pred_check_branch
    %282 = sbr.rel (0) target = $region41
  $region40: #{decoder_rnn_forward.1} parent=0 // pred_region
    _
  $region41: #{decoder_rnn_forward.1} parent=0 // pred_fallthru
    _
  // Predicated region
  $region42: #{decoder_rnn_forward.1} parent=0 // pred_check
    _
  $region43: #{decoder_rnn_forward.1} parent=0 // pred_check_branch
    %284 = sbr.rel (0) target = $region45
  $region44: #{decoder_rnn_forward.1} parent=0 // pred_region
    _
  $region45: #{decoder_rnn_forward.1} parent=0 // pred_fallthru
    _

</llo_original>
